<compile_context>
chip_gen: v7x
topology: tpu7x:2x2x1
jax: 0.10.0
libtpu: 0.0.40
codegen_flags: <defaults>
</compile_context>

<pallas_src>
import functools

import jax
import jax.numpy as jnp
from jax.experimental import pallas as pl
from jax.experimental.pallas import tpu as pltpu

BN_EPS = 1e-5
NUM_CLASSES = 10
LOGIT_PAD = 128  # lane-dense output width (sliced to num_classes outside the kernel)


# ----------------------------- pltpu.roll convention probe -----------------------------

def detect_roll_matches_jnp():
    """Tiny Pallas kernel that learns pltpu.roll's shift convention.

    Returns True if pltpu.roll(x, s, a) == jnp.roll(x, s, a)  (out[i] = x[i - s]).
    """
    def probe(x_ref, o_ref):
        o_ref[...] = pltpu.roll(x_ref[...], 1, 1)

    x = jnp.tile(jnp.arange(128, dtype=jnp.float32)[None, :], (8, 1))
    out = pl.pallas_call(
        probe, out_shape=jax.ShapeDtypeStruct((8, 128), jnp.float32))(x)
    v = float(out[0, 1])
    if v == 0.0:
        return True    # jnp.roll convention
    if v == 2.0:
        return False   # opposite convention
    raise RuntimeError(f"unexpected pltpu.roll probe value: {v}")


# ----------------------------- fused Pallas kernel -----------------------------

def resnet_kernel(x_ref, mA_ref, mC_ref, mE_ref, sel2_ref, sel3_ref, pool_ref,
                  wstem_ref, bstem_ref,
                  w11_ref, b11_ref, w12_ref, b12_ref,
                  w21_ref, b21_ref, w22_ref, b22_ref, wd2_ref, bd2_ref,
                  w31_ref, b31_ref, w32_ref, b32_ref, wd3_ref, bd3_ref,
                  fcw_ref, fcb_ref,
                  out_ref, *, W0, W1, W2, roll_like_jnp):
    """Whole ResNet_CIFAR forward for one batch tile (one grid step).

    Activations are channels-first (C, M) bf16 with M = b_tile*H*W (per level).
    3x3 pad=1 conv: lane-roll + 0/1 boundary mask per tap, sublane-stack into a
    (9*Cin, M) patch matrix, one bf16 MXU matmul with f32 accumulation.  BN is
    folded into the weights/biases.  Stride-2 (and the 1x1 downsample) reuse the
    stride-1 result through small 0/1 column-selection matmuls.  GAP + FC ride
    the MXU; the only HBM store is a lane-dense (b_tile, 128) logits slab.
    """

    def shifted(xin, off, mask):
        # y[:, i] = xin[:, i + off] where the tap stays inside its image, else 0.
        m = xin.shape[1]
        if off == 0:
            return xin
        s = (-off) % m if roll_like_jnp else off % m
        return pltpu.roll(xin, s, 1) * mask

    def conv3x3(xin, w_ref, b_ref, m_ref, w_img, relu):
        taps = []
        for t in range(9):                       # static unroll
            kh, kw = divmod(t, 3)
            off = (kh - 1) * w_img + (kw - 1)
            taps.append(shifted(xin, off, m_ref[t]))
        patches = jnp.concatenate(taps, axis=0)                    # (9*Cin, M) bf16
        acc = jnp.dot(w_ref[...], patches,
                      preferred_element_type=jnp.float32) + b_ref[...]
        if relu:
            acc = jnp.maximum(acc, 0.0)
        return acc                                                 # (Cout, M) f32

    def select(x_bf16, sel_ref):
        # stride-2 spatial subsampling as a 0/1 column-selection matmul
        return jnp.dot(x_bf16, sel_ref[...],
                       preferred_element_type=jnp.float32).astype(jnp.bfloat16)

    x = x_ref[0]                                                   # (32, M0) bf16

    # ---- stem: conv1 (pre-im2col'd input) + bn1 + relu ----
    h = jnp.dot(wstem_ref[...], x,
                preferred_element_type=jnp.float32) + bstem_ref[...]
    h = jnp.maximum(h, 0.0).astype(jnp.bfloat16)                   # (16, M0)

    # ---- layer1 / block0 (stride 1, identity shortcut) ----
    o = conv3x3(h, w11_ref, b11_ref, mA_ref, W0, relu=True).astype(jnp.bfloat16)
    o = conv3x3(o, w12_ref, b12_ref, mA_ref, W0, relu=False)
    h = jnp.maximum(o + h, 0.0).astype(jnp.bfloat16)               # (16, M0)

    # ---- layer2 / block0 (stride 2, 1x1 downsample) ----
    o = conv3x3(h, w21_ref, b21_ref, mA_ref, W0, relu=True).astype(jnp.bfloat16)
    o = select(o, sel2_ref)                                        # (32, M1)
    o = conv3x3(o, w22_ref, b22_ref, mC_ref, W1, relu=False)
    hs = select(h, sel2_ref)                                       # (16, M1)
    idn = jnp.dot(wd2_ref[...], hs,
                  preferred_element_type=jnp.float32) + bd2_ref[...]
    h = jnp.maximum(o + idn, 0.0).astype(jnp.bfloat16)             # (32, M1)

    # ---- layer3 / block0 (stride 2, 1x1 downsample) ----
    o = conv3x3(h, w31_ref, b31_ref, mC_ref, W1, relu=True).astype(jnp.bfloat16)
    o = select(o, sel3_ref)                                        # (64, M2)
    o = conv3x3(o, w32_ref, b32_ref, mE_ref, W2, relu=False)
    hs = select(h, sel3_ref)                                       # (32, M2)
    idn = jnp.dot(wd3_ref[...], hs,
                  preferred_element_type=jnp.float32) + bd3_ref[...]
    h = jnp.maximum(o + idn, 0.0).astype(jnp.bfloat16)             # (64, M2)

    # ---- global average pool (NT matmul on the MXU) + FC head ----
    pooled = jax.lax.dot_general(pool_ref[...], h, (((1,), (1,)), ((), ())),
                                 preferred_element_type=jnp.float32)        # (B, 64)
    logits = jnp.dot(pooled.astype(jnp.bfloat16), fcw_ref[...],
                     preferred_element_type=jnp.float32) + fcb_ref[...]     # (B, 128)
    out_ref[0] = logits.astype(out_ref.dtype)


# ----------------------------- constant setup (outside the kernel) -----------------------------

def _bn_scale_bias(bn):
    gamma, beta, mean, var = bn
    scale = gamma / jnp.sqrt(var + BN_EPS)
    bias = beta - mean * scale
    return scale, bias


def _fold_conv3x3_bn(w, bn):
    """(Cout,Cin,3,3) conv + BN -> bf16 (Cout, 9*Cin) weight (tap-major cols) + f32 bias."""
    scale, bias = _bn_scale_bias(bn)
    cout, cin = w.shape[0], w.shape[1]
    wc = jnp.transpose(w, (2, 3, 1, 0)).reshape(9 * cin, cout).T * scale[:, None]
    return wc.astype(jnp.bfloat16), bias.reshape(-1, 1).astype(jnp.float32)


def _fold_conv1x1_bn(w, bn):
    scale, bias = _bn_scale_bias(bn)
    wc = w[:, :, 0, 0] * scale[:, None]
    return wc.astype(jnp.bfloat16), bias.reshape(-1, 1).astype(jnp.float32)


def _build_masks(H, W, b_tile):
    """(9, 1, b_tile*H*W) bf16 validity masks for a 3x3 pad=1 conv (tap t = kh*3+kw)."""
    h_ok = lambda d: (jnp.arange(H) + d >= 0) & (jnp.arange(H) + d < H)
    w_ok = lambda d: (jnp.arange(W) + d >= 0) & (jnp.arange(W) + d < W)
    masks = []
    for kh in range(3):
        for kw in range(3):
            m = (h_ok(kh - 1)[:, None] & w_ok(kw - 1)[None, :]).reshape(1, H * W)
            masks.append(m)
    m = jnp.stack(masks).astype(jnp.bfloat16)          # (9, 1, H*W)
    return jnp.tile(m, (1, 1, b_tile))                 # same mask for every image in the tile


def _build_stride2_sel(H, W, b_tile):
    """(b*H*W, b*(H//2)*(W//2)) bf16 0/1 matrix selecting the even (h, w) positions."""
    Ho, Wo = H // 2, W // 2
    idx = jnp.arange(H * W)
    h, w = idx // W, idx % W
    keep = (h % 2 == 0) & (w % 2 == 0)
    dst = (h // 2) * Wo + (w // 2)
    sel = (keep[:, None] & (dst[:, None] == jnp.arange(Ho * Wo)[None, :])).astype(jnp.float32)
    return jnp.kron(jnp.eye(b_tile, dtype=jnp.float32), sel).astype(jnp.bfloat16)


def _build_pool(hw, b_tile):
    """(b, b*hw) bf16: per-image global average pool expressed as a matmul."""
    row = jnp.full((1, hw), 1.0 / hw, jnp.float32)
    return jnp.kron(jnp.eye(b_tile, dtype=jnp.float32), row).astype(jnp.bfloat16)


def prepare_operands(params, H, W, b_tile):
    """All constant kernel operands (everything except the input activations)."""
    H1, W1, H2, W2 = H // 2, W // 2, H // 4, W // 4

    mA = _build_masks(H, W, b_tile)            # 16x16 level
    mC = _build_masks(H1, W1, b_tile)          # 8x8 level
    mE = _build_masks(H2, W2, b_tile)          # 4x4 level
    sel2 = _build_stride2_sel(H, W, b_tile)    # 16x16 -> 8x8
    sel3 = _build_stride2_sel(H1, W1, b_tile)  # 8x8  -> 4x4
    pool = _build_pool(H2 * W2, b_tile)

    # stem: conv1 (3->16) with bn1 folded; input is pre-im2col'd to 32 rows (27 real)
    scale1, bias1 = _bn_scale_bias(params["bn1"])
    w = params["conv1_w"]                                                   # (16, 3, 3, 3)
    wstem = jnp.transpose(w, (2, 3, 1, 0)).reshape(27, 16).T * scale1[:, None]
    wstem = jnp.pad(wstem, ((0, 0), (0, 32 - 27))).astype(jnp.bfloat16)     # (16, 32)
    bstem = bias1.reshape(-1, 1).astype(jnp.float32)

    l1, l2, l3 = params["layer1"][0], params["layer2"][0], params["layer3"][0]
    w11, b11 = _fold_conv3x3_bn(l1["conv1_w"], l1["bn1"])
    w12, b12 = _fold_conv3x3_bn(l1["conv2_w"], l1["bn2"])
    w21, b21 = _fold_conv3x3_bn(l2["conv1_w"], l2["bn1"])
    w22, b22 = _fold_conv3x3_bn(l2["conv2_w"], l2["bn2"])
    wd2, bd2 = _fold_conv1x1_bn(l2["down_w"], l2["down_bn"])
    w31, b31 = _fold_conv3x3_bn(l3["conv1_w"], l3["bn1"])
    w32, b32 = _fold_conv3x3_bn(l3["conv2_w"], l3["bn2"])
    wd3, bd3 = _fold_conv1x1_bn(l3["down_w"], l3["down_bn"])

    fc_w, fc_b = params["fc_w"], params["fc_b"]
    nc = fc_w.shape[0]
    fcw = jnp.zeros((fc_w.shape[1], LOGIT_PAD), jnp.float32).at[:, :nc].set(fc_w.T)
    fcw = fcw.astype(jnp.bfloat16)
    fcb = jnp.zeros((1, LOGIT_PAD), jnp.float32).at[:, :nc].set(fc_b)

    return (mA, mC, mE, sel2, sel3, pool,
            wstem, bstem,
            w11, b11, w12, b12,
            w21, b21, w22, b22, wd2, bd2,
            w31, b31, w32, b32, wd3, bd3,
            fcw, fcb)


# ----------------------------- forward wrapper -----------------------------

def _const_idx(g, nd):
    return (0,) * nd


def _stem_im2col(x_nchw, b_tile):
    """(Npad, 3, H, W) f32 -> (G, 32, b_tile*H*W) bf16 stem patch slab (27 real rows)."""
    Npad, C, H, W = x_nchw.shape
    if C != 3:
        raise ValueError("ResNet_CIFAR stem expects 3 input channels")
    G = Npad // b_tile
    xp = jnp.pad(x_nchw, ((0, 0), (0, 0), (1, 1), (1, 1)))
    taps = [xp[:, :, kh:kh + H, kw:kw + W] for kh in range(3) for kw in range(3)]
    p = jnp.stack(taps, axis=1).reshape(Npad, 9 * C, H * W)          # (Npad, 27, HW)
    p = jnp.pad(p, ((0, 0), (0, 32 - 9 * C), (0, 0)))                # lane-friendly 32 rows
    p = p.reshape(G, b_tile, 32, H * W).transpose(0, 2, 1, 3).reshape(G, 32, b_tile * H * W)
    return p.astype(jnp.bfloat16)


@functools.partial(jax.jit, static_argnames=("b_tile", "roll_like_jnp"))
def resnet_cifar_forward(operands, x_nchw, *, b_tile, roll_like_jnp):
    N, C, H, W = x_nchw.shape
    G = -(-N // b_tile)
    Npad = G * b_tile
    if Npad != N:
        x_nchw = jnp.pad(x_nchw, ((0, Npad - N), (0, 0), (0, 0), (0, 0)))
    patches = _stem_im2col(x_nchw.astype(jnp.float32), b_tile)       # (G, 32, b*HW)

    M0 = b_tile * H * W
    kernel = functools.partial(resnet_kernel, W0=W, W1=W // 2, W2=W // 4,
                               roll_like_jnp=roll_like_jnp)

    in_specs = [pl.BlockSpec((1, 32, M0), lambda g: (g, 0, 0))]
    for op in operands:
        # Constant block index => fetched once, resident in VMEM across the grid.
        # TODO(synk): pl.Buffered(1) would single-buffer these constants (review
        #             item 6); skipped since the bf16 constants are already <0.5 MiB.
        in_specs.append(pl.BlockSpec(op.shape, functools.partial(_const_idx, nd=op.ndim)))
    out_spec = pl.BlockSpec((1, b_tile, LOGIT_PAD), lambda g: (g, 0, 0))

    logits_padded = pl.pallas_call(
        kernel,
        out_shape=jax.ShapeDtypeStruct((G, b_tile, LOGIT_PAD), jnp.float32),
        grid=(G,),
        in_specs=in_specs,
        out_specs=out_spec,
        compiler_params=pltpu.CompilerParams(
            dimension_semantics=("parallel",),       # v7x: batch tiles split across TCs
            vmem_limit_bytes=32 * 1024 * 1024),      # ample; keep <=48 MiB on v7x if scaled up
    )(patches, *operands)
    return logits_padded.reshape(Npad, LOGIT_PAD)[:N, :NUM_CLASSES]


# ----------------------------- parameter init (deterministic, PyTorch-equivalent) -----------------------------

def _kaiming_conv(key, cout, cin, k):
    # kaiming_normal_, mode='fan_out', nonlinearity='relu'
    fan_out = cout * k * k
    std = (2.0 / fan_out) ** 0.5
    return jax.random.normal(key, (cout, cin, k, k), jnp.float32) * std


def _bn_params(c):
    # gamma, beta, running_mean, running_var (PyTorch defaults after __init__)
    return (jnp.ones((c,), jnp.float32), jnp.zeros((c,), jnp.float32),
            jnp.zeros((c,), jnp.float32), jnp.ones((c,), jnp.float32))


def init_params(key, num_classes=10):
    keys = iter(jax.random.split(key, 32))
    params = {"conv1_w": _kaiming_conv(next(keys), 16, 3, 3), "bn1": _bn_params(16)}

    def block(cin, cout, stride):
        blk = {"conv1_w": _kaiming_conv(next(keys), cout, cin, 3), "bn1": _bn_params(cout),
               "conv2_w": _kaiming_conv(next(keys), cout, cout, 3), "bn2": _bn_params(cout)}
        if stride != 1 or cin != cout:
            blk["down_w"] = _kaiming_conv(next(keys), cout, cin, 1)
            blk["down_bn"] = _bn_params(cout)
        return blk

    # layers = [1, 1, 1]
    params["layer1"] = [block(16, 16, 1)]
    params["layer2"] = [block(16, 32, 2)]
    params["layer3"] = [block(32, 64, 2)]

    # nn.Linear default init: U(-1/sqrt(fan_in), 1/sqrt(fan_in))
    fan_in = 64
    bound = 1.0 / (fan_in ** 0.5)
    params["fc_w"] = jax.random.uniform(next(keys), (num_classes, fan_in),
                                        jnp.float32, -bound, bound)
    params["fc_b"] = jax.random.uniform(next(keys), (num_classes,),
                                        jnp.float32, -bound, bound)
    return params


# ----------------------------- main -----------------------------

if __name__ == "__main__":
    key = jax.random.PRNGKey(0)
    k_param, k_x = jax.random.split(key)
    params = init_params(k_param, num_classes=NUM_CLASSES)

    # CIFAR-like input: batch=2, channels=3, spatial=16 (NCHW, PyTorch convention)
    x = jax.random.normal(k_x, (2, 3, 16, 16), jnp.float32)
    N, _, H, W = x.shape

    # Keep >= 2 grid steps so v7x's second TensorCore gets work (no-op on v5e/v6e).
    b_tile = max(1, min(8, N // 2))

    roll_like_jnp = detect_roll_matches_jnp()            # pin down pltpu.roll convention
    operands = prepare_operands(params, H=H, W=W, b_tile=b_tile)

    logits = resnet_cifar_forward(operands, x, b_tile=b_tile,
                                  roll_like_jnp=roll_like_jnp)
    logits = jax.block_until_ready(logits)

    assert logits.shape == (N, NUM_CLASSES)
    assert bool(jnp.all(jnp.isfinite(logits)))
    print("KERNEL_OK")
</pallas_src>

<mosaic_0001>
module attributes {stable_mosaic.version = 11 : i64} {
  func.func @probe(%arg0: memref<8x128xf32, #tpu.memory_space<vmem>>, %arg1: memref<8x128xf32, #tpu.memory_space<vmem>>) attributes {dimension_semantics = [], scalar_prefetch = 0 : i64, scratch_operands = 0 : i64, tpu.core_type = #tpu.core_type<tc>} {
    %c0 = arith.constant 0 : index
    %c0_0 = arith.constant 0 : index
    %0 = vector.load %arg0[%c0, %c0_0] : memref<8x128xf32, #tpu.memory_space<vmem>>, vector<8x128xf32>
    %c1_i32 = arith.constant 1 : i32
    %1 = tpu.dynamic_rotate %0 by %c1_i32 dim 1 : vector<8x128xf32>, i32 -> vector<8x128xf32>
    %c0_1 = arith.constant 0 : index
    %c0_2 = arith.constant 0 : index
    %2 = vector.load %arg1[%c0_1, %c0_2] : memref<8x128xf32, #tpu.memory_space<vmem>>, vector<8x128xf32>
    tpu.vector_store %arg1[%c0_1, %c0_2], %1 {strides = array<i32>} : memref<8x128xf32, #tpu.memory_space<vmem>>, vector<8x128xf32>,
    return
  }
}

</mosaic_0001>

<llo_original>
// kernel: tpu_custom_call.1
$region0: #{tpu_custom_call.1}
  #allocation0 [shape = 'u32[]', space=smem, size = 0x4, offset = 0x4, fixed_abs, tag = 'smem constant byte address 0x4 - core index']
  #allocation1 [shape = 'u32[144,128]{1,0:T(1,128)}', space=vmem, size = 0x12000, scoped, tag = 'internal scratch']
  %s0 = inlined_call_operand.hbm [shape: f32[8,128], index: 0, kind: input, shape index: {}]
  %s1 = inlined_call_operand.hbm [shape: f32[8,128], index: 1, kind: output, shape index: {}]
  %s2 = sld [smem:[#allocation0]]
  $region18: #{tpu_custom_call.1} parent=0
    _
  %s4 = ssub.s32 1, %s2
  %s5 = scalar_select 0, %s4, %s2
  $region1: #{tpu_custom_call.1} parent=0
    #allocation2 [shape = 'u8[4096]{0}', space=vmem, size = 0x1000, scoped, tag = 'input window, operand 0, single buffered']
    #allocation3 [shape = 's32[1]{0}', space=sflag, size = 0x4, scoped, tag = 'scoped memory for tpu_custom_call.1']
    #allocation4 [shape = 's32[1]{0}', space=sflag, size = 0x4, scoped, tag = 'scoped memory for tpu_custom_call.1']
    #allocation5 [shape = 'u8[4096]{0}', space=vmem, size = 0x1000, scoped, tag = 'output window, operand 0, single buffered']
    %6 = vsyncpa [#allocation3], 0
    %7 = vsyncpa [#allocation4], 0
    // Predicated region
    $region2: #{tpu_custom_call.1} parent=1 // pred_check
      _
    $region3: #{tpu_custom_call.1} parent=1 // pred_check_branch
      %9 = sbr.rel (0) target = $region5
    $region4: #{tpu_custom_call.1} parent=1 // pred_region
      %s11 = ssub.s32 128, 128
      %12 = vsyncadd [#allocation3], %s11
      %s14 = sshll.u32 [#allocation2], 4
      %s15 = int_to_ptr.vmem [resolvable:$true] %s14
      %17 = dma.hbm_to_vmem [thread:$0]  %s0, 128, %s15, [#allocation3]
    $region5: #{tpu_custom_call.1} parent=1 // pred_fallthru
      _
    // Predicated region
    $region6: #{tpu_custom_call.1} parent=1 // pred_check
      _
    $region7: #{tpu_custom_call.1} parent=1 // pred_check_branch
      %19 = sbr.rel (0) target = $region9
    $region8: #{tpu_custom_call.1} parent=1 // pred_region
      %20 = dma.done [#allocation3], 128
    $region9: #{tpu_custom_call.1} parent=1 // pred_fallthru
      _
    %v21 = vld [vmem:[#allocation2] sm:$0xff]
    %22 = vrot.lane.b32.xlu0 %v21, 1
    %v23 = vpop.permute.xlu0 %22
    %24 = vst [vmem:[#allocation5] sm:$0xff] %v23
    // Predicated region
    $region10: #{tpu_custom_call.1} parent=1 // pred_check
      _
    $region11: #{tpu_custom_call.1} parent=1 // pred_check_branch
      %26 = sbr.rel (0) target = $region13
    $region12: #{tpu_custom_call.1} parent=1 // pred_region
      %s28 = ssub.s32 128, 128
      %29 = vsyncadd [#allocation4], %s28
      %s31 = sshll.u32 [#allocation5], 4
      %s32 = int_to_ptr.vmem [resolvable:$true] %s31
      %34 = dma.vmem_to_hbm [thread:$0]  %s32, 128, %s1, [#allocation4]
    $region13: #{tpu_custom_call.1} parent=1 // pred_fallthru
      _
    // Predicated region
    $region14: #{tpu_custom_call.1} parent=1 // pred_check
      _
    $region15: #{tpu_custom_call.1} parent=1 // pred_check_branch
      %36 = sbr.rel (0) target = $region17
    $region16: #{tpu_custom_call.1} parent=1 // pred_region
      %37 = dma.done [#allocation4], 128
    $region17: #{tpu_custom_call.1} parent=1 // pred_fallthru
      _
    %38 = vsyncpa [#allocation3], 1
    %39 = vsyncpa [#allocation4], 1

</llo_original>
